<compile_context>
chip_gen: v6e
topology: v6e:2x2x1
jax: 0.10.0
libtpu: 0.0.40
codegen_flags: <defaults>
</compile_context>

<pallas_src>
import functools

import jax
import jax.numpy as jnp
from jax.experimental import pallas as pl
from jax.experimental.pallas import tpu as pltpu

LANE = 128
SUBLANE_BF16 = 16           # min second-to-last tile for bf16 blocks


def _round_up(x, m):
    return ((x + m - 1) // m) * m


def _make_mlp_kernel(num_layers):
    """Kernel specialized (unrolled) for a static number of layers.

    refs = (x_ref, w0_ref, b0_ref, w1_ref, b1_ref, ..., out_ref)
    x/weights are bf16; biases, accumulator and output are f32.
    BatchNorm (inference mode) is already folded into w_i / b_i for hidden layers.
    """

    def kernel(*refs):
        x_ref = refs[0]
        out_ref = refs[-1]
        h = x_ref[...]                                              # [TM, D0] bf16
        for i in range(num_layers):
            w_ref = refs[1 + 2 * i]                                 # [Dip, Dop] bf16
            b_ref = refs[2 + 2 * i]                                 # [1,  Dop] f32
            acc = jnp.dot(h, w_ref[...],
                          preferred_element_type=jnp.float32)       # bf16 MXU, f32 acc
            acc = acc + b_ref[...]                                  # bias (+ folded BN shift)
            if i < num_layers - 1:
                acc = jnp.maximum(acc, 0.0)                         # ReLU
                h = acc.astype(jnp.bfloat16)                        # back to bf16 for next MXU pass
            else:
                out_ref[...] = acc.astype(out_ref.dtype)

    return kernel


def prepare_mlp_params(weights, biases, bn_params, *, eps=1e-5,
                       param_dtype=jnp.bfloat16):
    """One-time (hoisted) preprocessing: fold inference-mode BN, transpose to [din, dout],
    zero-pad output dims to lane multiples, chain K dims, and cast weights to bf16.

    weights[i]: [dout_i, din_i] (nn.Linear layout), biases[i]: [dout_i],
    bn_params[i] = (gamma, beta, running_mean, running_var) for hidden layers.
    Returns tuple of (w_padded [Dk, Dop_p] bf16, b_padded [1, Dop_p] f32).
    """
    num_layers = len(weights)
    prepared = []
    prev_width = None
    for i in range(num_layers):
        w_t = jnp.asarray(weights[i], jnp.float32).T                # [din, dout]
        b = jnp.asarray(biases[i], jnp.float32)
        if i < num_layers - 1:
            gamma, beta, rm, rv = (jnp.asarray(p, jnp.float32) for p in bn_params[i])
            s = gamma * jax.lax.rsqrt(rv + eps)
            w_t = w_t * s[None, :]
            b = b * s + (beta - rm * s)
        din, dout = w_t.shape
        # K dim: true input_dim for layer 0 (x is streamed unpadded), otherwise the
        # previous layer's padded width. Zero-padded rows/cols keep the math exact.
        k_target = din if i == 0 else prev_width
        dout_p = _round_up(dout, LANE)
        w_p = jnp.zeros((k_target, dout_p), jnp.float32).at[:din, :dout].set(w_t)
        b_p = jnp.zeros((1, dout_p), jnp.float32).at[0, :dout].set(b)
        prepared.append((w_p.astype(param_dtype), b_p))
        prev_width = dout_p
    return tuple(prepared)


def _choose_tm(n_rows, *, sublane=SUBLANE_BF16, max_tile=512):
    """Row-tile size: big tiles to amortize per-step overhead, but keep >=2 (preferably
    an even number of) grid steps so v7x's two TensorCores both get work."""
    if n_rows <= sublane:
        return sublane
    tm = max_tile
    if pl.cdiv(n_rows, tm) < 2:
        tm = _round_up(pl.cdiv(n_rows, 2), sublane)
    grid = pl.cdiv(n_rows, tm)
    if grid > 1 and grid % 2 == 1:
        tm_even = _round_up(pl.cdiv(n_rows, grid + 1), sublane)
        if tm_even >= sublane and pl.cdiv(n_rows, tm_even) % 2 == 0:
            tm = tm_even
    return tm


@functools.partial(jax.jit, static_argnames=("out_dim",))
def mlp_forward(x, params, *, out_dim):
    """MLP forward (fused Pallas kernel).

    x:      [N, input_dim] float32 (cast to bf16 for the MXU; accumulation stays f32)
    params: output of prepare_mlp_params() (pre-folded / pre-padded / bf16 weights)
    """
    num_layers = len(params)
    N, in_dim = x.shape
    out_p = params[-1][0].shape[1]                                  # padded output width

    tm = _choose_tm(N)
    grid_n = pl.cdiv(N, tm)                                         # ragged last tile is masked

    x_bf = x.astype(jnp.bfloat16)

    args = [x_bf]
    in_specs = [pl.BlockSpec((tm, in_dim), lambda i: (i, 0))]
    flops = 0
    weight_bytes = 0
    max_width = max(in_dim, out_p)
    for (w_p, b_p) in params:
        args += [w_p, b_p]
        in_specs += [
            pl.BlockSpec(w_p.shape, lambda i: (0, 0)),              # whole weight resident
            pl.BlockSpec(b_p.shape, lambda i: (0, 0)),
        ]
        flops += 2 * N * w_p.shape[0] * w_p.shape[1]
        weight_bytes += w_p.size * w_p.dtype.itemsize + b_p.size * b_p.dtype.itemsize
        max_width = max(max_width, w_p.shape[1])

    bytes_accessed = x_bf.size * x_bf.dtype.itemsize + N * out_p * 4 + weight_bytes

    # VMEM budget from the actual footprint (double-buffered streams + resident weights
    # + live f32 intermediates), with headroom under v7x's 64 MiB physical VMEM.
    footprint = (2 * tm * in_dim * 2                                # x tiles (bf16, 2 bufs)
                 + 2 * tm * out_p * 4                               # out tiles (f32, 2 bufs)
                 + 2 * weight_bytes                                 # resident weights (conservative)
                 + 4 * tm * max_width * 4)                          # live f32 intermediates
    vmem_limit = int(min(60 * 1024 * 1024, max(16 * 1024 * 1024, 2 * footprint)))

    out = pl.pallas_call(
        _make_mlp_kernel(num_layers),
        out_shape=jax.ShapeDtypeStruct((N, out_p), jnp.float32),
        grid=(grid_n,),
        in_specs=in_specs,
        out_specs=pl.BlockSpec((tm, out_p), lambda i: (i, 0)),
        compiler_params=pltpu.CompilerParams(
            dimension_semantics=("parallel",),                      # shard row tiles across TCs
            vmem_limit_bytes=vmem_limit,
        ),
        cost_estimate=pl.CostEstimate(flops=flops, transcendentals=0,
                                      bytes_accessed=bytes_accessed),
    )(*args)

    return out[:, :out_dim]


def mlp_forward_reference(x, weights, biases, bn_params, eps=1e-5):
    """Pure-JAX f32 reference: Linear -> BatchNorm1d(running stats) -> ReLU, final Linear."""
    h = x
    num_layers = len(weights)
    for i in range(num_layers - 1):
        z = h @ weights[i].T + biases[i]
        gamma, beta, rm, rv = bn_params[i]
        z = gamma * (z - rm) / jnp.sqrt(rv + eps) + beta
        h = jnp.maximum(z, 0.0)
    return h @ weights[-1].T + biases[-1]


if __name__ == "__main__":
    key = jax.random.PRNGKey(0)
    keys = jax.random.split(key, 32)
    kidx = 0

    def linear_init(dout, din):
        global kidx
        bound = 1.0 / (din ** 0.5)
        w = jax.random.uniform(keys[kidx], (dout, din), minval=-bound, maxval=bound,
                               dtype=jnp.float32)
        b = jax.random.uniform(keys[kidx + 1], (dout,), minval=-bound, maxval=bound,
                               dtype=jnp.float32)
        kidx += 2
        return w, b

    # ---- multi-layer MLP: num_layers=3, input=48, hidden=32, output=24, batch=200 ----
    N, input_dim, hidden_dim, output_dim, num_layers = 200, 48, 32, 24, 3
    dims = [input_dim] + [hidden_dim] * (num_layers - 1) + [output_dim]

    weights, biases, bn_params = [], [], []
    for i in range(num_layers):
        w, b = linear_init(dims[i + 1], dims[i])
        weights.append(w)
        biases.append(b)
        if i < num_layers - 1:
            d = dims[i + 1]
            gamma = jax.random.uniform(keys[kidx], (d,), minval=0.5, maxval=1.5)
            beta = 0.1 * jax.random.normal(keys[kidx + 1], (d,))
            rmean = 0.5 * jax.random.normal(keys[kidx + 2], (d,))
            rvar = jax.random.uniform(keys[kidx + 3], (d,), minval=0.5, maxval=2.0)
            kidx += 4
            bn_params.append((gamma, beta, rmean, rvar))

    x = jax.random.normal(keys[kidx], (N, input_dim), dtype=jnp.float32)
    kidx += 1

    # One-time (hoisted) parameter preparation; the jitted forward only runs the kernel.
    params = prepare_mlp_params(tuple(weights), tuple(biases), tuple(bn_params))
    out = jax.block_until_ready(mlp_forward(x, params, out_dim=output_dim))
    ref = mlp_forward_reference(x, weights, biases, bn_params)
    assert out.shape == (N, output_dim)
    # bf16 matmul inputs (f32 accumulation) -> loosened tolerance vs f32 reference.
    assert jnp.allclose(out, ref, atol=5e-2, rtol=5e-2), "multi-layer MLP mismatch vs reference"

    # ---- single-layer path (linear_or_not=True): plain nn.Linear ----
    N1, in1, out1 = 16, 32, 20
    w1, b1 = linear_init(out1, in1)
    x1 = jax.random.normal(keys[kidx], (N1, in1), dtype=jnp.float32)
    kidx += 1
    params1 = prepare_mlp_params((w1,), (b1,), ())
    out_single = jax.block_until_ready(mlp_forward(x1, params1, out_dim=out1))
    ref_single = x1 @ w1.T + b1
    assert out_single.shape == (N1, out1)
    assert jnp.allclose(out_single, ref_single, atol=5e-2, rtol=5e-2), "1-layer MLP mismatch"

    print("KERNEL_OK")
</pallas_src>

<mosaic_0001>
module attributes {stable_mosaic.version = 11 : i64} {
  func.func @kernel(%arg0: i32, %arg1: memref<112x48xbf16, #tpu.memory_space<vmem>>, %arg2: memref<48x128xbf16, #tpu.memory_space<vmem>>, %arg3: memref<1x128xf32, #tpu.memory_space<vmem>>, %arg4: memref<128x128xbf16, #tpu.memory_space<vmem>>, %arg5: memref<1x128xf32, #tpu.memory_space<vmem>>, %arg6: memref<128x128xbf16, #tpu.memory_space<vmem>>, %arg7: memref<1x128xf32, #tpu.memory_space<vmem>>, %arg8: memref<112x128xf32, #tpu.memory_space<vmem>>) attributes {dimension_semantics = [#tpu.dimension_semantics<parallel>], iteration_bounds = array<i64: 2>, scalar_prefetch = 0 : i64, scratch_operands = 0 : i64, tpu.core_type = #tpu.core_type<tc>, window_params = [{transform_indices = @transform_0, window_bounds = array<i64: 112, 48>}, {pipeline_mode = #tpu.pipeline_mode<synchronous>, transform_indices = @transform_1, window_bounds = array<i64: 48, 128>}, {pipeline_mode = #tpu.pipeline_mode<synchronous>, transform_indices = @transform_2, window_bounds = array<i64: 1, 128>}, {pipeline_mode = #tpu.pipeline_mode<synchronous>, transform_indices = @transform_3, window_bounds = array<i64: 128, 128>}, {pipeline_mode = #tpu.pipeline_mode<synchronous>, transform_indices = @transform_4, window_bounds = array<i64: 1, 128>}, {pipeline_mode = #tpu.pipeline_mode<synchronous>, transform_indices = @transform_5, window_bounds = array<i64: 128, 128>}, {pipeline_mode = #tpu.pipeline_mode<synchronous>, transform_indices = @transform_6, window_bounds = array<i64: 1, 128>}, {transform_indices = @transform_7, window_bounds = array<i64: 112, 128>}]} {
    %c0 = arith.constant 0 : index
    %c0_0 = arith.constant 0 : index
    %0 = vector.load %arg1[%c0, %c0_0] : memref<112x48xbf16, #tpu.memory_space<vmem>>, vector<112x48xbf16>
    %c0_1 = arith.constant 0 : index
    %c0_2 = arith.constant 0 : index
    %1 = vector.load %arg2[%c0_1, %c0_2] : memref<48x128xbf16, #tpu.memory_space<vmem>>, vector<48x128xbf16>
    %cst = arith.constant dense<0.000000e+00> : vector<112x128xf32>
    %2 = tpu.matmul %0, %1, %cst {dimension_numbers = #tpu.dot_dimension_numbers<[1], [0], [0], [1], [0, 0, 1, 1], [], []>} : vector<112x48xbf16>, vector<48x128xbf16>, vector<112x128xf32> -> vector<112x128xf32>
    %c0_3 = arith.constant 0 : index
    %c0_4 = arith.constant 0 : index
    %3 = vector.load %arg3[%c0_3, %c0_4] : memref<1x128xf32, #tpu.memory_space<vmem>>, vector<1x128xf32>
    %4 = vector.broadcast %3 : vector<1x128xf32> to vector<112x128xf32>
    %5 = arith.addf %2, %4 : vector<112x128xf32>
    %cst_5 = arith.constant 0.000000e+00 : f32
    %6 = vector.broadcast %cst_5 : f32 to vector<112x128xf32>
    %7 = arith.maximumf %5, %6 : vector<112x128xf32>
    %8 = arith.truncf %7 : vector<112x128xf32> to vector<112x128xbf16>
    %c0_6 = arith.constant 0 : index
    %c0_7 = arith.constant 0 : index
    %9 = vector.load %arg4[%c0_6, %c0_7] : memref<128x128xbf16, #tpu.memory_space<vmem>>, vector<128x128xbf16>
    %cst_8 = arith.constant dense<0.000000e+00> : vector<112x128xf32>
    %10 = tpu.matmul %8, %9, %cst_8 {dimension_numbers = #tpu.dot_dimension_numbers<[1], [0], [0], [1], [0, 0, 1, 1], [], []>} : vector<112x128xbf16>, vector<128x128xbf16>, vector<112x128xf32> -> vector<112x128xf32>
    %c0_9 = arith.constant 0 : index
    %c0_10 = arith.constant 0 : index
    %11 = vector.load %arg5[%c0_9, %c0_10] : memref<1x128xf32, #tpu.memory_space<vmem>>, vector<1x128xf32>
    %12 = vector.broadcast %11 : vector<1x128xf32> to vector<112x128xf32>
    %13 = arith.addf %10, %12 : vector<112x128xf32>
    %cst_11 = arith.constant 0.000000e+00 : f32
    %14 = vector.broadcast %cst_11 : f32 to vector<112x128xf32>
    %15 = arith.maximumf %13, %14 : vector<112x128xf32>
    %16 = arith.truncf %15 : vector<112x128xf32> to vector<112x128xbf16>
    %c0_12 = arith.constant 0 : index
    %c0_13 = arith.constant 0 : index
    %17 = vector.load %arg6[%c0_12, %c0_13] : memref<128x128xbf16, #tpu.memory_space<vmem>>, vector<128x128xbf16>
    %cst_14 = arith.constant dense<0.000000e+00> : vector<112x128xf32>
    %18 = tpu.matmul %16, %17, %cst_14 {dimension_numbers = #tpu.dot_dimension_numbers<[1], [0], [0], [1], [0, 0, 1, 1], [], []>} : vector<112x128xbf16>, vector<128x128xbf16>, vector<112x128xf32> -> vector<112x128xf32>
    %c0_15 = arith.constant 0 : index
    %c0_16 = arith.constant 0 : index
    %19 = vector.load %arg7[%c0_15, %c0_16] : memref<1x128xf32, #tpu.memory_space<vmem>>, vector<1x128xf32>
    %20 = vector.broadcast %19 : vector<1x128xf32> to vector<112x128xf32>
    %21 = arith.addf %18, %20 : vector<112x128xf32>
    %c0_17 = arith.constant 0 : index
    %c0_18 = arith.constant 0 : index
    %22 = vector.load %arg8[%c0_17, %c0_18] : memref<112x128xf32, #tpu.memory_space<vmem>>, vector<112x128xf32>
    tpu.vector_store %arg8[%c0_17, %c0_18], %21 {strides = array<i32>} : memref<112x128xf32, #tpu.memory_space<vmem>>, vector<112x128xf32>,
    return
  }
  func.func @transform_0(%arg0: i32) -> (i32, i32) {
    %c0_i32 = arith.constant 0 : i32
    %c0_i32_0 = arith.constant 0 : i32
    return %arg0, %c0_i32 : i32, i32
  }
  func.func @transform_1(%arg0: i32) -> (i32, i32) {
    %c0_i32 = arith.constant 0 : i32
    %c0_i32_0 = arith.constant 0 : i32
    %c0_i32_1 = arith.constant 0 : i32
    return %c0_i32, %c0_i32_0 : i32, i32
  }
  func.func @transform_2(%arg0: i32) -> (i32, i32) {
    %c0_i32 = arith.constant 0 : i32
    %c0_i32_0 = arith.constant 0 : i32
    %c0_i32_1 = arith.constant 0 : i32
    return %c0_i32, %c0_i32_0 : i32, i32
  }
  func.func @transform_3(%arg0: i32) -> (i32, i32) {
    %c0_i32 = arith.constant 0 : i32
    %c0_i32_0 = arith.constant 0 : i32
    %c0_i32_1 = arith.constant 0 : i32
    return %c0_i32, %c0_i32_0 : i32, i32
  }
  func.func @transform_4(%arg0: i32) -> (i32, i32) {
    %c0_i32 = arith.constant 0 : i32
    %c0_i32_0 = arith.constant 0 : i32
    %c0_i32_1 = arith.constant 0 : i32
    return %c0_i32, %c0_i32_0 : i32, i32
  }
  func.func @transform_5(%arg0: i32) -> (i32, i32) {
    %c0_i32 = arith.constant 0 : i32
    %c0_i32_0 = arith.constant 0 : i32
    %c0_i32_1 = arith.constant 0 : i32
    return %c0_i32, %c0_i32_0 : i32, i32
  }
  func.func @transform_6(%arg0: i32) -> (i32, i32) {
    %c0_i32 = arith.constant 0 : i32
    %c0_i32_0 = arith.constant 0 : i32
    %c0_i32_1 = arith.constant 0 : i32
    return %c0_i32, %c0_i32_0 : i32, i32
  }
  func.func @transform_7(%arg0: i32) -> (i32, i32) {
    %c0_i32 = arith.constant 0 : i32
    %c0_i32_0 = arith.constant 0 : i32
    return %arg0, %c0_i32 : i32, i32
  }
}

</mosaic_0001>

<llo_original>
// kernel: mlp_forward.1
$region0: #{mlp_forward.1}
  #allocation0 [shape = 'u32[]', space=smem, size = 0x4, offset = 0x4, fixed_abs, tag = 'smem constant byte address 0x4 - core index']
  #allocation1 [shape = 'u32[144,128]{1,0:T(1,128)}', space=vmem, size = 0x12000, scoped, tag = 'internal scratch']
  %s0 = inlined_call_operand.vmem [shape: bf16[200,48], index: 0, kind: input, shape index: {}]
  %s1 = inlined_call_operand.vmem [shape: bf16[48,128], index: 1, kind: input, shape index: {}]
  %s2 = inlined_call_operand.vmem [shape: f32[1,128], index: 2, kind: input, shape index: {}]
  %s3 = inlined_call_operand.vmem [shape: bf16[128,128], index: 3, kind: input, shape index: {}]
  %s4 = inlined_call_operand.vmem [shape: f32[1,128], index: 4, kind: input, shape index: {}]
  %s5 = inlined_call_operand.vmem [shape: bf16[128,128], index: 5, kind: input, shape index: {}]
  %s6 = inlined_call_operand.vmem [shape: f32[1,128], index: 6, kind: input, shape index: {}]
  %s7 = inlined_call_operand.vmem [shape: f32[200,128], index: 7, kind: output, shape index: {}]
  %s8 = sld [smem:[#allocation0]]
  $region109: #{mlp_forward.1} parent=0
    _
  %s10 = ssub.s32 1, %s8
  %s11 = scalar_select 0, %s10, %s8
  $region1: #{mlp_forward.1} parent=0
    #allocation2 [shape = 'u8[114688]{0}', space=vmem, size = 0x1c000, scoped, tag = 'output window, operand 0']
    loop: start=0, step=1, limit=4
    $region2: #{mlp_forward.1} parent=1 // loop_pre_header
      _
    $region3: #{mlp_forward.1} parent=1 // loop_header
      %s13 = sphi 0, %s17
      %p14 = scmp.ge.s32.totalorder %s13, 4
      %s23 = sphi 0, %s25
      %s26 = sphi 0, %s23
      %s27 = sphi 0, %s26
      %s43 = sphi 0, %s27
      %s47 = sphi 0, %s47
      %s49 = sphi 0, %s47
      %s50 = sphi 0, %s49
      %s64 = sphi 0, %s50
      %s68 = sphi 0, %s68
      %s70 = sphi 0, %s68
      %s71 = sphi 0, %s70
      %s85 = sphi 0, %s71
      %s89 = sphi 0, %s89
      %s91 = sphi 0, %s89
      %s92 = sphi 0, %s91
      %s106 = sphi 0, %s92
      %s110 = sphi 0, %s110
      %s112 = sphi 0, %s110
      %s113 = sphi 0, %s112
      %s127 = sphi 0, %s113
      %s131 = sphi 0, %s131
      %s133 = sphi 0, %s131
      %s134 = sphi 0, %s133
      %s148 = sphi 0, %s134
      %s152 = sphi 0, %s152
      %s154 = sphi 0, %s152
      %s155 = sphi 0, %s154
      %s169 = sphi 0, %s155
      %s175 = sphi 0, %s177
      %s178 = sphi 0, %s175
      %s179 = sphi 0, %s178
      %s195 = sphi 0, %s179
    $region4: #{mlp_forward.1} parent=1 // loop_header_branch
      %16 = sbr.rel (%p14) target = $region8
    $region5: #{mlp_forward.1} parent=1 // loop_body
      %s18 = ssub.s32 %s13, 1
      %s19 = ssub.s32 %s13, 2
      %s20 = sadd.s32 %s13, 1
      %s21 = ssub.s32 %s13, %s20
      %p22 = scmp.eq.s32.totalorder %s21, 0
      %s24 = sadd.s32 %s23, 1
      %s25 = scalar_select %p22, %s23, %s24
      %p28 = pneg %p22
      %p29 = scmp.eq.s32.totalorder %s13, 1
      %p30 = por %p28, %p29
      %p31 = scmp.ne.s32.totalorder %s23, %s26
      %p32 = scmp.eq.s32.totalorder %s13, 0
      %p33 = por %p31, %p32
      %p34 = scmp.ne.s32.totalorder %s23, %s26
      %p35 = scmp.eq.s32.totalorder %s18, 1
      %p36 = por %p34, %p35
      %p37 = scmp.ne.s32.totalorder %s26, %s27
      %p38 = scmp.eq.s32.totalorder %s18, 0
      %p39 = por %p37, %p38
      %p40 = scmp.ne.s32.totalorder %s26, %s27
      %p41 = scmp.eq.s32.totalorder %s19, 1
      %p42 = por %p40, %p41
      %p44 = scmp.ne.s32.totalorder %s27, %s43
      %p45 = scmp.eq.s32.totalorder %s19, 0
      %p46 = por %p44, %p45
      %s48 = sadd.s32 %s47, 1
      %p51 = scmp.eq.s32.totalorder %s13, 1
      %p52 = scmp.ne.s32.totalorder %s47, %s49
      %p53 = scmp.eq.s32.totalorder %s13, 0
      %p54 = por %p52, %p53
      %p55 = scmp.ne.s32.totalorder %s47, %s49
      %p56 = scmp.eq.s32.totalorder %s18, 1
      %p57 = por %p55, %p56
      %p58 = scmp.ne.s32.totalorder %s49, %s50
      %p59 = scmp.eq.s32.totalorder %s18, 0
      %p60 = por %p58, %p59
      %p61 = scmp.ne.s32.totalorder %s49, %s50
      %p62 = scmp.eq.s32.totalorder %s19, 1
      %p63 = por %p61, %p62
      %p65 = scmp.ne.s32.totalorder %s50, %s64
      %p66 = scmp.eq.s32.totalorder %s19, 0
      %p67 = por %p65, %p66
      %s69 = sadd.s32 %s68, 1
      %p72 = scmp.eq.s32.totalorder %s13, 1
      %p73 = scmp.ne.s32.totalorder %s68, %s70
      %p74 = scmp.eq.s32.totalorder %s13, 0
      %p75 = por %p73, %p74
      %p76 = scmp.ne.s32.totalorder %s68, %s70
      %p77 = scmp.eq.s32.totalorder %s18, 1
      %p78 = por %p76, %p77
      %p79 = scmp.ne.s32.totalorder %s70, %s71
      %p80 = scmp.eq.s32.totalorder %s18, 0
      %p81 = por %p79, %p80
      %p82 = scmp.ne.s32.totalorder %s70, %s71
      %p83 = scmp.eq.s32.totalorder %s19, 1
      %p84 = por %p82, %p83
      %p86 = scmp.ne.s32.totalorder %s71, %s85
      %p87 = scmp.eq.s32.totalorder %s19, 0
      %p88 = por %p86, %p87
      %s90 = sadd.s32 %s89, 1
      %p93 = scmp.eq.s32.totalorder %s13, 1
      %p94 = scmp.ne.s32.totalorder %s89, %s91
      %p95 = scmp.eq.s32.totalorder %s13, 0
      %p96 = por %p94, %p95
      %p97 = scmp.ne.s32.totalorder %s89, %s91
      %p98 = scmp.eq.s32.totalorder %s18, 1
      %p99 = por %p97, %p98
      %p100 = scmp.ne.s32.totalorder %s91, %s92
      %p101 = scmp.eq.s32.totalorder %s18, 0
      %p102 = por %p100, %p101
      %p103 = scmp.ne.s32.totalorder %s91, %s92
      %p104 = scmp.eq.s32.totalorder %s19, 1
      %p105 = por %p103, %p104
      %p107 = scmp.ne.s32.totalorder %s92, %s106
      %p108 = scmp.eq.s32.totalorder %s19, 0
      %p109 = por %p107, %p108
      %s111 = sadd.s32 %s110, 1
      %p114 = scmp.eq.s32.totalorder %s13, 1
      %p115 = scmp.ne.s32.totalorder %s110, %s112
      %p116 = scmp.eq.s32.totalorder %s13, 0
      %p117 = por %p115, %p116
      %p118 = scmp.ne.s32.totalorder %s110, %s112
      %p119 = scmp.eq.s32.totalorder %s18, 1
      %p120 = por %p118, %p119
      %p121 = scmp.ne.s32.totalorder %s112, %s113
      %p122 = scmp.eq.s32.totalorder %s18, 0
      %p123 = por %p121, %p122
      %p124 = scmp.ne.s32.totalorder %s112, %s113
      %p125 = scmp.eq.s32.totalorder %s19, 1
      %p126 = por %p124, %p125
      %p128 = scmp.ne.s32.totalorder %s113, %s127
      %p129 = scmp.eq.s32.totalorder %s19, 0
      %p130 = por %p128, %p129
      %s132 = sadd.s32 %s131, 1
      %p135 = scmp.eq.s32.totalorder %s13, 1
      %p136 = scmp.ne.s32.totalorder %s131, %s133
      %p137 = scmp.eq.s32.totalorder %s13, 0
      %p138 = por %p136, %p137
      %p139 = scmp.ne.s32.totalorder %s131, %s133
      %p140 = scmp.eq.s32.totalorder %s18, 1
      %p141 = por %p139, %p140
      %p142 = scmp.ne.s32.totalorder %s133, %s134
      %p143 = scmp.eq.s32.totalorder %s18, 0
      %p144 = por %p142, %p143
      %p145 = scmp.ne.s32.totalorder %s133, %s134
      %p146 = scmp.eq.s32.totalorder %s19, 1
      %p147 = por %p145, %p146
      %p149 = scmp.ne.s32.totalorder %s134, %s148
      %p150 = scmp.eq.s32.totalorder %s19, 0
      %p151 = por %p149, %p150
      %s153 = sadd.s32 %s152, 1
      %p156 = scmp.eq.s32.totalorder %s13, 1
      %p157 = scmp.ne.s32.totalorder %s152, %s154
      %p158 = scmp.eq.s32.totalorder %s13, 0
      %p159 = por %p157, %p158
      %p160 = scmp.ne.s32.totalorder %s152, %s154
      %p161 = scmp.eq.s32.totalorder %s18, 1
      %p162 = por %p160, %p161
      %p163 = scmp.ne.s32.totalorder %s154, %s155
      %p164 = scmp.eq.s32.totalorder %s18, 0
      %p165 = por %p163, %p164
      %p166 = scmp.ne.s32.totalorder %s154, %s155
      %p167 = scmp.eq.s32.totalorder %s19, 1
      %p168 = por %p166, %p167
      %p170 = scmp.ne.s32.totalorder %s155, %s169
      %p171 = scmp.eq.s32.totalorder %s19, 0
      %p172 = por %p170, %p171
      %s173 = ssub.s32 %s13, %s20
      %p174 = scmp.eq.s32.totalorder %s173, 0
      %s176 = sadd.s32 %s175, 1
      %s177 = scalar_select %p174, %s175, %s176
      %p180 = pneg %p174
      %p181 = scmp.eq.s32.totalorder %s13, 1
      %p182 = por %p180, %p181
      %p183 = scmp.ne.s32.totalorder %s175, %s178
      %p184 = scmp.eq.s32.totalorder %s13, 0
      %p185 = por %p183, %p184
      %p186 = scmp.ne.s32.totalorder %s175, %s178
      %p187 = scmp.eq.s32.totalorder %s18, 1
      %p188 = por %p186, %p187
      %p189 = scmp.ne.s32.totalorder %s178, %s179
      %p190 = scmp.eq.s32.totalorder %s18, 0
      %p191 = por %p189, %p190
      %p192 = scmp.ne.s32.totalorder %s178, %s179
      %p193 = scmp.eq.s32.totalorder %s19, 1
      %p194 = por %p192, %p193
      %p196 = scmp.ne.s32.totalorder %s179, %s195
      %p197 = scmp.eq.s32.totalorder %s19, 0
      %p198 = por %p196, %p197
      %p199 = scmp.le.s32.totalorder 1, %s13
      %p200 = scmp.lt.s32.totalorder %s13, 3
      %p201 = pnand %p199, %p200
      %p202 = pneg %p201
      // Predicated region
      $region9: #{mlp_forward.1} parent=5 // pred_check
        _
      $region10: #{mlp_forward.1} parent=5 // pred_check_branch
        %204 = sbr.rel (%p201) target = $region12
      $region11: #{mlp_forward.1} parent=5 // pred_region
        %s205 = ssub.s32 %s13, 1
        // Predicated region
        $region13: #{mlp_forward.1} parent=11 // pred_check
          %p206 = pneg %p60
        $region14: #{mlp_forward.1} parent=11 // pred_check_branch
          %208 = sbr.rel (%p206) target = $region16
        $region15: #{mlp_forward.1} parent=11 // pred_region
          _
        $region16: #{mlp_forward.1} parent=11 // pred_fallthru
          _
        // Predicated region
        $region17: #{mlp_forward.1} parent=11 // pred_check
          %p209 = pneg %p81
        $region18: #{mlp_forward.1} parent=11 // pred_check_branch
          %211 = sbr.rel (%p209) target = $region20
        $region19: #{mlp_forward.1} parent=11 // pred_region
          _
        $region20: #{mlp_forward.1} parent=11 // pred_fallthru
          _
        // Predicated region
        $region21: #{mlp_forward.1} parent=11 // pred_check
          %p212 = pneg %p102
        $region22: #{mlp_forward.1} parent=11 // pred_check_branch
          %214 = sbr.rel (%p212) target = $region24
        $region23: #{mlp_forward.1} parent=11 // pred_region
          _
        $region24: #{mlp_forward.1} parent=11 // pred_fallthru
          _
        // Predicated region
        $region25: #{mlp_forward.1} parent=11 // pred_check
          %p215 = pneg %p123
        $region26: #{mlp_forward.1} parent=11 // pred_check_branch
          %217 = sbr.rel (%p215) target = $region28
        $region27: #{mlp_forward.1} parent=11 // pred_region
          _
        $region28: #{mlp_forward.1} parent=11 // pred_fallthru
          _
        // Predicated region
        $region29: #{mlp_forward.1} parent=11 // pred_check
          %p218 = pneg %p144
        $region30: #{mlp_forward.1} parent=11 // pred_check_branch
          %220 = sbr.rel (%p218) target = $region32
        $region31: #{mlp_forward.1} parent=11 // pred_region
          _
        $region32: #{mlp_forward.1} parent=11 // pred_fallthru
          _
        // Predicated region
        $region33: #{mlp_forward.1} parent=11 // pred_check
          %p221 = pneg %p165
        $region34: #{mlp_forward.1} parent=11 // pred_check_branch
          %223 = sbr.rel (%p221) target = $region36
        $region35: #{mlp_forward.1} parent=11 // pred_region
          _
        $region36: #{mlp_forward.1} parent=11 // pred_fallthru
          _
      $region12: #{mlp_forward.1} parent=5 // pred_fallthru
        _
      %p224 = scmp.lt.s32.totalorder %s13, 2
      // Predicated region
      $region37: #{mlp_forward.1} parent=5 // pred_check
        %p225 = pneg %p224
      $region38: #{mlp_forward.1} parent=5 // pred_check_branch
        %227 = sbr.rel (%p225) target = $region40
      $region39: #{mlp_forward.1} parent=5 // pred_region
        // Predicated region
        $region41: #{mlp_forward.1} parent=39 // pred_check
          %p228 = pneg %p33
        $region42: #{mlp_forward.1} parent=39 // pred_check_branch
          %230 = sbr.rel (%p228) target = $region44
        $region43: #{mlp_forward.1} parent=39 // pred_region
          %s231 = smul.u32 14, %s13
          %s232 = ssub.s32 25, %s231
          %p233 = scmp.lt.s32.totalorder %s232, 14
          %s234 = scalar_select %p233, %s232, 14
          %s235 = smul.u32 64, %s234
          %p236 = scmp.lt.s32.totalorder %s231, 24
          %s237 = scalar_select %p236, %s231, 24
          %s238 = smul.addr %s237, 4
          %s239 = scalar_lea.vmem %s0, %s238
          %s240 = smul.u32 14, %s13
          %s241 = ssub.s32 25, %s240
          %p242 = scmp.lt.s32.totalorder %s241, 14
          %s243 = scalar_select %p242, %s241, 14
          %s244 = smul.u32 64, %s243
        $region44: #{mlp_forward.1} parent=39 // pred_fallthru
          _
      $region40: #{mlp_forward.1} parent=5 // pred_fallthru
        _
      %p245 = scmp.le.s32.totalorder 1, %s13
      %p246 = scmp.lt.s32.totalorder %s13, 3
      %p247 = pnand %p245, %p246
      %p248 = pneg %p247
      // Predicated region
      $region45: #{mlp_forward.1} parent=5 // pred_check
        _
      $region46: #{mlp_forward.1} parent=5 // pred_check_branch
        %250 = sbr.rel (%p247) target = $region48
      $region47: #{mlp_forward.1} parent=5 // pred_region
        %s251 = ssub.s32 %s13, 1
        %s252 = smul.u32 14, %s18
        %s253 = ssub.s32 25, %s252
        %p254 = scmp.lt.s32.totalorder %s253, 14
        %s255 = scalar_select %p254, %s253, 14
        %s256 = smul.u32 64, %s255
        %p257 = scmp.lt.s32.totalorder %s252, 24
        %s258 = scalar_select %p257, %s252, 24
        %s259 = smul.addr %s258, 4
        %s260 = scalar_lea.vmem %s0, %s259
        %p261 = pneg %p39
        %p262 = pneg %p36
        %p263 = pneg %p60
        %p264 = pneg %p57
        %p265 = pneg %p81
        %p266 = pneg %p78
        %p267 = pneg %p102
        %p268 = pneg %p99
        %p269 = pneg %p123
        %p270 = pneg %p120
        %p271 = pneg %p144
        %p272 = pneg %p141
        %p273 = pneg %p165
        %p274 = pneg %p162
        %p275 = pneg %p191
        %p276 = pneg %p188
        %s277 = sand.u32 %s178, 1
        %s278 = sand.u32 %s178, 1
        %s279 = smul.addr %s278, 112
        %s280 = scalar_lea.vmem [#allocation2], %s279
        %s281 = smul.u32 14, %s18
        %s282 = ssub.s32 25, %s281
        %p283 = scmp.lt.s32.totalorder %s282, 14
        %s284 = scalar_select %p283, %s282, 14
        %s285 = smul.u32 64, %s284
        %p286 = scmp.lt.s32.totalorder %s281, 24
        %s287 = scalar_select %p286, %s281, 24
        %s288 = smul.addr %s287, 4
        %s289 = scalar_lea.vmem %s0, %s288
        %s290 = smul.u32 14, %s18
        %s291 = ssub.s32 25, %s290
        %p292 = scmp.lt.s32.totalorder %s291, 14
        %s293 = scalar_select %p292, %s291, 14
        %s294 = smul.u32 64, %s293
        %s295 = smul.u32 14, %s18
        %s296 = ssub.s32 25, %s295
        %p297 = scmp.lt.s32.totalorder %s296, 14
        %s298 = scalar_select %p297, %s296, 14
        %s299 = smul.u32 128, %s298
        %v301 = vld [vmem:[%s289] sm:$0xf]
        %v302 = vld [vmem:[%s289 + $0x4] sm:$0xf]
        %v303 = vld [vmem:[%s289 + $0x8] sm:$0xf]
        %v304 = vld [vmem:[%s289 + $0xc] sm:$0xf]
        %v305 = vld [vmem:[%s289 + $0x10] sm:$0xf]
        %v306 = vld [vmem:[%s289 + $0x14] sm:$0xf]
        %v307 = vld [vmem:[%s289 + $0x18] sm:$0xf]
        %v308 = vld [vmem:[%s289 + $0x1c] sm:$0xf]
        %v309 = vld [vmem:[%s289 + $0x20] sm:$0xf]
        %v310 = vld [vmem:[%s289 + $0x24] sm:$0xf]
        %v311 = vld [vmem:[%s289 + $0x28] sm:$0xf]
        %v312 = vld [vmem:[%s289 + $0x2c] sm:$0xf]
        %v313 = vld [vmem:[%s289 + $0x30] sm:$0xf]
        %v314 = vld [vmem:[%s289 + $0x34] sm:$0xf]
        %v315 = vld [vmem:[%s1] sm:$0xf]
        %v316 = vld [vmem:[%s1 + $0x4] sm:$0xf]
        %v317 = vld [vmem:[%s1 + $0x8] sm:$0xf]
        %v318 = vld [vmem:[%s1 + $0xc] sm:$0xf]
        %v319 = vld [vmem:[%s1 + $0x10] sm:$0xf]
        %v320 = vld [vmem:[%s1 + $0x14] sm:$0xf]
        %v321 = vld [vmem:[%s2] sm:$0x1]
        %v323 = vlaneseq
        %v324 = vshrl.u32 %v323, 7
        %v325 = vsub.s32 0, %v324
        %v326 = vrot.slane %v321, %v325
        %v342 = vunpack.c.l.b16 %v301
        %v343 = vunpack.c.l.b16 %v302
        %v344 = vunpack.c.l.b16 %v303
        %v345 = vunpack.c.l.b16 %v304
        %v346 = vunpack.c.l.b16 %v305
        %v347 = vunpack.c.l.b16 %v306
        %v348 = vunpack.c.l.b16 %v307
        %v349 = vunpack.c.l.b16 %v308
        %v350 = vunpack.c.l.b16 %v309
        %v351 = vunpack.c.l.b16 %v310
        %v352 = vunpack.c.l.b16 %v311
        %v353 = vunpack.c.l.b16 %v312
        %v354 = vunpack.c.l.b16 %v313
        %v355 = vunpack.c.l.b16 %v314
        %v356 = vpack.c.b16 %v343, %v342
        %v357 = vpack.c.b16 %v345, %v344
        %v358 = vpack.c.b16 %v347, %v346
        %v359 = vpack.c.b16 %v349, %v348
        %v360 = vpack.c.b16 %v351, %v350
        %v361 = vpack.c.b16 %v353, %v352
        %v362 = vpack.c.b16 %v355, %v354
        %v369 = vunpack.c.l.b16 %v315
        %v370 = vunpack.c.l.b16 %v316
        %v371 = vunpack.c.l.b16 %v317
        %v372 = vunpack.c.l.b16 %v318
        %v373 = vunpack.c.l.b16 %v319
        %v374 = vunpack.c.l.b16 %v320
        %v375 = vpack.c.b16 %v370, %v369
        %v376 = vpack.c.b16 %v372, %v371
        %v377 = vpack.c.b16 %v374, %v373
        %vm381 = vcmask 392192
        %v383 = vsel %vm381, %v356, 0
        %v386 = vsel %vm381, %v357, 0
        %v389 = vsel %vm381, %v358, 0
        %v392 = vsel %vm381, %v359, 0
        %v395 = vsel %vm381, %v360, 0
        %v398 = vsel %vm381, %v361, 0
        %v401 = vsel %vm381, %v362, 0
        %403 = vmatprep.subr.bf16.mxu0 0
        %404 = vmatpush1.bf16.msra.mxu0 0
        %405 = vmatprep.subr.bf16.mxu0 0
        %406 = vmatpush1.bf16.msra.mxu0 0
        %407 = vmatprep.subr.bf16.mxu0 0
        %408 = vmatpush1.bf16.msra.mxu0 0
        %409 = vmatprep.subr.bf16.mxu0 0
        %410 = vmatpush1.bf16.msra.mxu0 0
        %411 = vmatprep.subr.bf16.mxu0 0
        %412 = vmatpush1.bf16.msra.mxu0 0
        %413 = vmatprep.subr.bf16.mxu0 0
        %414 = vmatpush1.bf16.msra.mxu0 %v377
        %415 = vmatprep.subr.bf16.mxu0 0
        %416 = vmatpush1.bf16.msra.mxu0 %v376
        %417 = vmatprep.subr.bf16.mxu0 0
        %418 = vmatpush1.bf16.msra.mxu0 %v375
        %419 = vmatprep.subr.bf16.mxu0 0
        %420 = vmatpush2.bf16.msra.mxu0 0
        %421 = vmatprep.subr.bf16.mxu0 0
        %422 = vmatpush2.bf16.msra.mxu0 0
        %423 = vmatprep.subr.bf16.mxu0 0
        %424 = vmatpush2.bf16.msra.mxu0 0
        %425 = vmatprep.subr.bf16.mxu0 0
        %426 = vmatpush2.bf16.msra.mxu0 0
        %427 = vmatprep.subr.bf16.mxu0 0
        %428 = vmatpush2.bf16.msra.mxu0 0
        %429 = vmatprep.subr.bf16.mxu0 0
        %430 = vmatpush2.bf16.msra.mxu0 0
        %431 = vmatprep.subr.bf16.mxu0 0
        %432 = vmatpush2.bf16.msra.mxu0 0
        %433 = vmatprep.subr.bf16.mxu0 0
        %434 = vmatpush2.bf16.msra.mxu0 0
        %435 = vmatprep.mubr.bf16.mxu0 0
        %436 = vmatmul.mubr.bf16.gmra.mxu0 %v383
        %v437 = vpop.f32.mrf.mxu0
        %v438 = vadd.f32 %v326, %v437
        %v439 = vpop.f32.mrf.mxu0
        %v440 = vpop.f32.mrf.mxu0
        %v441 = vadd.f32 %v326, %v440
        %v442 = vpop.f32.mrf.mxu0
        %443 = vmatprep.mubr.bf16.mxu0 0
        %444 = vmatmul.mubr.bf16.gmra.mxu0 %v386
        %v445 = vpop.f32.mrf.mxu0
        %v446 = vadd.f32 %v326, %v445
        %v447 = vpop.f32.mrf.mxu0
        %v448 = vpop.f32.mrf.mxu0
        %v449 = vadd.f32 %v326, %v448
        %v450 = vpop.f32.mrf.mxu0
        %451 = vmatprep.mubr.bf16.mxu0 0
        %452 = vmatmul.mubr.bf16.gmra.mxu0 %v389
        %v453 = vpop.f32.mrf.mxu0
        %v454 = vadd.f32 %v326, %v453
        %v455 = vpop.f32.mrf.mxu0
        %v456 = vpop.f32.mrf.mxu0
        %v457 = vadd.f32 %v326, %v456
        %v458 = vpop.f32.mrf.mxu0
        %459 = vmatprep.mubr.bf16.mxu0 0
        %460 = vmatmul.mubr.bf16.gmra.mxu0 %v392
        %v461 = vpop.f32.mrf.mxu0
        %v462 = vadd.f32 %v326, %v461
        %v463 = vpop.f32.mrf.mxu0
        %v464 = vpop.f32.mrf.mxu0
        %v465 = vadd.f32 %v326, %v464
        %v466 = vpop.f32.mrf.mxu0
        %467 = vmatprep.mubr.bf16.mxu0 0
        %468 = vmatmul.mubr.bf16.gmra.mxu0 %v395
        %v469 = vpop.f32.mrf.mxu0
        %v470 = vadd.f32 %v326, %v469
        %v471 = vpop.f32.mrf.mxu0
        %v472 = vpop.f32.mrf.mxu0
        %v473 = vadd.f32 %v326, %v472
        %v474 = vpop.f32.mrf.mxu0
        %475 = vmatprep.mubr.bf16.mxu0 0
        %476 = vmatmul.mubr.bf16.gmra.mxu0 %v398
        %v477 = vpop.f32.mrf.mxu0
        %v478 = vadd.f32 %v326, %v477
        %v479 = vpop.f32.mrf.mxu0
        %v480 = vpop.f32.mrf.mxu0
        %v481 = vadd.f32 %v326, %v480
        %v482 = vpop.f32.mrf.mxu0
        %483 = vmatprep.mubr.bf16.mxu0 0
        %484 = vmatmul.mubr.bf16.gmra.mxu0 %v401
        %v485 = vpop.f32.mrf.mxu0
        %v486 = vadd.f32 %v326, %v485
        %v487 = vpop.f32.mrf.mxu0
        %v488 = vpop.f32.mrf.mxu0
        %v489 = vadd.f32 %v326, %v488
        %v490 = vpop.f32.mrf.mxu0
        %491 = vdwg.mxu0
        %v492 = vmax.f32 %v438, 0.0
        %v493 = vmax.f32 %v441, 0.0
        %v494 = vmax.f32 %v446, 0.0
        %v495 = vmax.f32 %v449, 0.0
        %v496 = vmax.f32 %v454, 0.0
        %v497 = vmax.f32 %v457, 0.0
        %v498 = vmax.f32 %v462, 0.0
        %v499 = vmax.f32 %v465, 0.0
        %v500 = vmax.f32 %v470, 0.0
        %v501 = vmax.f32 %v473, 0.0
        %v502 = vmax.f32 %v478, 0.0
        %v503 = vmax.f32 %v481, 0.0
        %v504 = vmax.f32 %v486, 0.0
        %v505 = vmax.f32 %v489, 0.0
        %v506 = vpack.c.bf16 %v493, %v492
        %v507 = vpack.c.bf16 %v495, %v494
        %v508 = vpack.c.bf16 %v497, %v496
        %v509 = vpack.c.bf16 %v499, %v498
        %v510 = vpack.c.bf16 %v501, %v500
        %v511 = vpack.c.bf16 %v503, %v502
        %v512 = vpack.c.bf16 %v505, %v504
        %v513 = vld [vmem:[%s3] sm:$0xf]
        %v514 = vld [vmem:[%s3 + $0x4] sm:$0xf]
        %v515 = vld [vmem:[%s3 + $0x8] sm:$0xf]
        %v516 = vld [vmem:[%s3 + $0xc] sm:$0xf]
        %v517 = vld [vmem:[%s3 + $0x10] sm:$0xf]
        %v518 = vld [vmem:[%s3 + $0x14] sm:$0xf]
        %v519 = vld [vmem:[%s3 + $0x18] sm:$0xf]
        %v520 = vld [vmem:[%s3 + $0x1c] sm:$0xf]
        %v521 = vld [vmem:[%s3 + $0x20] sm:$0xf]
        %v522 = vld [vmem:[%s3 + $0x24] sm:$0xf]
        %v523 = vld [vmem:[%s3 + $0x28] sm:$0xf]
        %v524 = vld [vmem:[%s3 + $0x2c] sm:$0xf]
        %v525 = vld [vmem:[%s3 + $0x30] sm:$0xf]
        %v526 = vld [vmem:[%s3 + $0x34] sm:$0xf]
        %v527 = vld [vmem:[%s3 + $0x38] sm:$0xf]
        %v528 = vld [vmem:[%s3 + $0x3c] sm:$0xf]
        %v529 = vld [vmem:[%s4] sm:$0x1]
        %v531 = vlaneseq
        %v532 = vshrl.u32 %v531, 7
        %v533 = vsub.s32 0, %v532
        %v534 = vrot.slane %v529, %v533
        %v552 = vunpack.c.l.b16 %v513
        %v553 = vunpack.c.l.b16 %v514
        %v554 = vunpack.c.l.b16 %v515
        %v555 = vunpack.c.l.b16 %v516
        %v556 = vunpack.c.l.b16 %v517
        %v557 = vunpack.c.l.b16 %v518
        %v558 = vunpack.c.l.b16 %v519
        %v559 = vunpack.c.l.b16 %v520
        %v560 = vunpack.c.l.b16 %v521
        %v561 = vunpack.c.l.b16 %v522
        %v562 = vunpack.c.l.b16 %v523
        %v563 = vunpack.c.l.b16 %v524
        %v564 = vunpack.c.l.b16 %v525
        %v565 = vunpack.c.l.b16 %v526
        %v566 = vunpack.c.l.b16 %v527
        %v567 = vunpack.c.l.b16 %v528
        %v568 = vpack.c.b16 %v553, %v552
        %v569 = vpack.c.b16 %v555, %v554
        %v570 = vpack.c.b16 %v557, %v556
        %v571 = vpack.c.b16 %v559, %v558
        %v572 = vpack.c.b16 %v561, %v560
        %v573 = vpack.c.b16 %v563, %v562
        %v574 = vpack.c.b16 %v565, %v564
        %v575 = vpack.c.b16 %v567, %v566
        %584 = vmatprep.subr.bf16.mxu0 0
        %585 = vmatpush1.bf16.msra.mxu0 %v575
        %586 = vmatprep.subr.bf16.mxu0 0
        %587 = vmatpush1.bf16.msra.mxu0 %v574
        %588 = vmatprep.subr.bf16.mxu0 0
        %589 = vmatpush1.bf16.msra.mxu0 %v573
        %590 = vmatprep.subr.bf16.mxu0 0
        %591 = vmatpush1.bf16.msra.mxu0 %v572
        %592 = vmatprep.subr.bf16.mxu0 0
        %593 = vmatpush1.bf16.msra.mxu0 %v571
        %594 = vmatprep.subr.bf16.mxu0 0
        %595 = vmatpush1.bf16.msra.mxu0 %v570
        %596 = vmatprep.subr.bf16.mxu0 0
        %597 = vmatpush1.bf16.msra.mxu0 %v569
        %598 = vmatprep.subr.bf16.mxu0 0
        %599 = vmatpush1.bf16.msra.mxu0 %v568
        %600 = vmatprep.subr.bf16.mxu0 0
        %601 = vmatpush2.bf16.msra.mxu0 0
        %602 = vmatprep.subr.bf16.mxu0 0
        %603 = vmatpush2.bf16.msra.mxu0 0
        %604 = vmatprep.subr.bf16.mxu0 0
        %605 = vmatpush2.bf16.msra.mxu0 0
        %606 = vmatprep.subr.bf16.mxu0 0
        %607 = vmatpush2.bf16.msra.mxu0 0
        %608 = vmatprep.subr.bf16.mxu0 0
        %609 = vmatpush2.bf16.msra.mxu0 0
        %610 = vmatprep.subr.bf16.mxu0 0
        %611 = vmatpush2.bf16.msra.mxu0 0
        %612 = vmatprep.subr.bf16.mxu0 0
        %613 = vmatpush2.bf16.msra.mxu0 0
        %614 = vmatprep.subr.bf16.mxu0 0
        %615 = vmatpush2.bf16.msra.mxu0 0
        %616 = vmatprep.mubr.bf16.mxu0 0
        %617 = vmatmul.mubr.bf16.gmra.mxu0 %v506
        %v618 = vpop.f32.mrf.mxu0
        %v619 = vadd.f32 %v534, %v618
        %v620 = vpop.f32.mrf.mxu0
        %v621 = vpop.f32.mrf.mxu0
        %v622 = vadd.f32 %v534, %v621
        %v623 = vpop.f32.mrf.mxu0
        %624 = vmatprep.mubr.bf16.mxu0 0
        %625 = vmatmul.mubr.bf16.gmra.mxu0 %v507
        %v626 = vpop.f32.mrf.mxu0
        %v627 = vadd.f32 %v534, %v626
        %v628 = vpop.f32.mrf.mxu0
        %v629 = vpop.f32.mrf.mxu0
        %v630 = vadd.f32 %v534, %v629
        %v631 = vpop.f32.mrf.mxu0
        %632 = vmatprep.mubr.bf16.mxu0 0
        %633 = vmatmul.mubr.bf16.gmra.mxu0 %v508
        %v634 = vpop.f32.mrf.mxu0
        %v635 = vadd.f32 %v534, %v634
        %v636 = vpop.f32.mrf.mxu0
        %v637 = vpop.f32.mrf.mxu0
        %v638 = vadd.f32 %v534, %v637
        %v639 = vpop.f32.mrf.mxu0
        %640 = vmatprep.mubr.bf16.mxu0 0
        %641 = vmatmul.mubr.bf16.gmra.mxu0 %v509
        %v642 = vpop.f32.mrf.mxu0
        %v643 = vadd.f32 %v534, %v642
        %v644 = vpop.f32.mrf.mxu0
        %v645 = vpop.f32.mrf.mxu0
        %v646 = vadd.f32 %v534, %v645
        %v647 = vpop.f32.mrf.mxu0
        %648 = vmatprep.mubr.bf16.mxu0 0
        %649 = vmatmul.mubr.bf16.gmra.mxu0 %v510
        %v650 = vpop.f32.mrf.mxu0
        %v651 = vadd.f32 %v534, %v650
        %v652 = vpop.f32.mrf.mxu0
        %v653 = vpop.f32.mrf.mxu0
        %v654 = vadd.f32 %v534, %v653
        %v655 = vpop.f32.mrf.mxu0
        %656 = vmatprep.mubr.bf16.mxu0 0
        %657 = vmatmul.mubr.bf16.gmra.mxu0 %v511
        %v658 = vpop.f32.mrf.mxu0
        %v659 = vadd.f32 %v534, %v658
        %v660 = vpop.f32.mrf.mxu0
        %v661 = vpop.f32.mrf.mxu0
        %v662 = vadd.f32 %v534, %v661
        %v663 = vpop.f32.mrf.mxu0
        %664 = vmatprep.mubr.bf16.mxu0 0
        %665 = vmatmul.mubr.bf16.gmra.mxu0 %v512
        %v666 = vpop.f32.mrf.mxu0
        %v667 = vadd.f32 %v534, %v666
        %v668 = vpop.f32.mrf.mxu0
        %v669 = vpop.f32.mrf.mxu0
        %v670 = vadd.f32 %v534, %v669
        %v671 = vpop.f32.mrf.mxu0
        %672 = vdwg.mxu0
        %v673 = vmax.f32 %v619, 0.0
        %v674 = vmax.f32 %v622, 0.0
        %v675 = vmax.f32 %v627, 0.0
        %v676 = vmax.f32 %v630, 0.0
        %v677 = vmax.f32 %v635, 0.0
        %v678 = vmax.f32 %v638, 0.0
        %v679 = vmax.f32 %v643, 0.0
        %v680 = vmax.f32 %v646, 0.0
        %v681 = vmax.f32 %v651, 0.0
        %v682 = vmax.f32 %v654, 0.0
        %v683 = vmax.f32 %v659, 0.0
        %v684 = vmax.f32 %v662, 0.0
        %v685 = vmax.f32 %v667, 0.0
        %v686 = vmax.f32 %v670, 0.0
        %v687 = vpack.c.bf16 %v674, %v673
        %v688 = vpack.c.bf16 %v676, %v675
        %v689 = vpack.c.bf16 %v678, %v677
        %v690 = vpack.c.bf16 %v680, %v679
        %v691 = vpack.c.bf16 %v682, %v681
        %v692 = vpack.c.bf16 %v684, %v683
        %v693 = vpack.c.bf16 %v686, %v685
        %v694 = vld [vmem:[%s5] sm:$0xf]
        %v695 = vld [vmem:[%s5 + $0x4] sm:$0xf]
        %v696 = vld [vmem:[%s5 + $0x8] sm:$0xf]
        %v697 = vld [vmem:[%s5 + $0xc] sm:$0xf]
        %v698 = vld [vmem:[%s5 + $0x10] sm:$0xf]
        %v699 = vld [vmem:[%s5 + $0x14] sm:$0xf]
        %v700 = vld [vmem:[%s5 + $0x18] sm:$0xf]
        %v701 = vld [vmem:[%s5 + $0x1c] sm:$0xf]
        %v702 = vld [vmem:[%s5 + $0x20] sm:$0xf]
        %v703 = vld [vmem:[%s5 + $0x24] sm:$0xf]
        %v704 = vld [vmem:[%s5 + $0x28] sm:$0xf]
        %v705 = vld [vmem:[%s5 + $0x2c] sm:$0xf]
        %v706 = vld [vmem:[%s5 + $0x30] sm:$0xf]
        %v707 = vld [vmem:[%s5 + $0x34] sm:$0xf]
        %v708 = vld [vmem:[%s5 + $0x38] sm:$0xf]
        %v709 = vld [vmem:[%s5 + $0x3c] sm:$0xf]
        %v710 = vld [vmem:[%s6] sm:$0x1]
        %v712 = vlaneseq
        %v713 = vshrl.u32 %v712, 7
        %v714 = vsub.s32 0, %v713
        %v715 = vrot.slane %v710, %v714
        %v733 = vunpack.c.l.b16 %v694
        %v734 = vunpack.c.l.b16 %v695
        %v735 = vunpack.c.l.b16 %v696
        %v736 = vunpack.c.l.b16 %v697
        %v737 = vunpack.c.l.b16 %v698
        %v738 = vunpack.c.l.b16 %v699
        %v739 = vunpack.c.l.b16 %v700
        %v740 = vunpack.c.l.b16 %v701
        %v741 = vunpack.c.l.b16 %v702
        %v742 = vunpack.c.l.b16 %v703
        %v743 = vunpack.c.l.b16 %v704
        %v744 = vunpack.c.l.b16 %v705
        %v745 = vunpack.c.l.b16 %v706
        %v746 = vunpack.c.l.b16 %v707
        %v747 = vunpack.c.l.b16 %v708
        %v748 = vunpack.c.l.b16 %v709
        %v749 = vpack.c.b16 %v734, %v733
        %v750 = vpack.c.b16 %v736, %v735
        %v751 = vpack.c.b16 %v738, %v737
        %v752 = vpack.c.b16 %v740, %v739
        %v753 = vpack.c.b16 %v742, %v741
        %v754 = vpack.c.b16 %v744, %v743
        %v755 = vpack.c.b16 %v746, %v745
        %v756 = vpack.c.b16 %v748, %v747
        %765 = vmatprep.subr.bf16.mxu0 0
        %766 = vmatpush1.bf16.msra.mxu0 %v756
        %767 = vmatprep.subr.bf16.mxu0 0
        %768 = vmatpush1.bf16.msra.mxu0 %v755
        %769 = vmatprep.subr.bf16.mxu0 0
        %770 = vmatpush1.bf16.msra.mxu0 %v754
        %771 = vmatprep.subr.bf16.mxu0 0
        %772 = vmatpush1.bf16.msra.mxu0 %v753
        %773 = vmatprep.subr.bf16.mxu0 0
        %774 = vmatpush1.bf16.msra.mxu0 %v752
        %775 = vmatprep.subr.bf16.mxu0 0
        %776 = vmatpush1.bf16.msra.mxu0 %v751
        %777 = vmatprep.subr.bf16.mxu0 0
        %778 = vmatpush1.bf16.msra.mxu0 %v750
        %779 = vmatprep.subr.bf16.mxu0 0
        %780 = vmatpush1.bf16.msra.mxu0 %v749
        %781 = vmatprep.subr.bf16.mxu0 0
        %782 = vmatpush2.bf16.msra.mxu0 0
        %783 = vmatprep.subr.bf16.mxu0 0
        %784 = vmatpush2.bf16.msra.mxu0 0
        %785 = vmatprep.subr.bf16.mxu0 0
        %786 = vmatpush2.bf16.msra.mxu0 0
        %787 = vmatprep.subr.bf16.mxu0 0
        %788 = vmatpush2.bf16.msra.mxu0 0
        %789 = vmatprep.subr.bf16.mxu0 0
        %790 = vmatpush2.bf16.msra.mxu0 0
        %791 = vmatprep.subr.bf16.mxu0 0
        %792 = vmatpush2.bf16.msra.mxu0 0
        %793 = vmatprep.subr.bf16.mxu0 0
        %794 = vmatpush2.bf16.msra.mxu0 0
        %795 = vmatprep.subr.bf16.mxu0 0
        %796 = vmatpush2.bf16.msra.mxu0 0
        %797 = vmatprep.mubr.bf16.mxu0 0
        %798 = vmatmul.mubr.bf16.gmra.mxu0 %v687
        %v799 = vpop.f32.mrf.mxu0
        %v800 = vadd.f32 %v715, %v799
        %v801 = vpop.f32.mrf.mxu0
        %v802 = vpop.f32.mrf.mxu0
        %v803 = vadd.f32 %v715, %v802
        %v804 = vpop.f32.mrf.mxu0
        %805 = vmatprep.mubr.bf16.mxu0 0
        %806 = vmatmul.mubr.bf16.gmra.mxu0 %v688
        %v807 = vpop.f32.mrf.mxu0
        %v808 = vadd.f32 %v715, %v807
        %v809 = vpop.f32.mrf.mxu0
        %v810 = vpop.f32.mrf.mxu0
        %v811 = vadd.f32 %v715, %v810
        %v812 = vpop.f32.mrf.mxu0
        %813 = vmatprep.mubr.bf16.mxu0 0
        %814 = vmatmul.mubr.bf16.gmra.mxu0 %v689
        %v815 = vpop.f32.mrf.mxu0
        %v816 = vadd.f32 %v715, %v815
        %v817 = vpop.f32.mrf.mxu0
        %v818 = vpop.f32.mrf.mxu0
        %v819 = vadd.f32 %v715, %v818
        %v820 = vpop.f32.mrf.mxu0
        %821 = vmatprep.mubr.bf16.mxu0 0
        %822 = vmatmul.mubr.bf16.gmra.mxu0 %v690
        %v823 = vpop.f32.mrf.mxu0
        %v824 = vadd.f32 %v715, %v823
        %v825 = vpop.f32.mrf.mxu0
        %v826 = vpop.f32.mrf.mxu0
        %v827 = vadd.f32 %v715, %v826
        %v828 = vpop.f32.mrf.mxu0
        %829 = vmatprep.mubr.bf16.mxu0 0
        %830 = vmatmul.mubr.bf16.gmra.mxu0 %v691
        %v831 = vpop.f32.mrf.mxu0
        %v832 = vadd.f32 %v715, %v831
        %v833 = vpop.f32.mrf.mxu0
        %v834 = vpop.f32.mrf.mxu0
        %v835 = vadd.f32 %v715, %v834
        %v836 = vpop.f32.mrf.mxu0
        %837 = vmatprep.mubr.bf16.mxu0 0
        %838 = vmatmul.mubr.bf16.gmra.mxu0 %v692
        %v839 = vpop.f32.mrf.mxu0
        %v840 = vadd.f32 %v715, %v839
        %v841 = vpop.f32.mrf.mxu0
        %v842 = vpop.f32.mrf.mxu0
        %v843 = vadd.f32 %v715, %v842
        %v844 = vpop.f32.mrf.mxu0
        %845 = vmatprep.mubr.bf16.mxu0 0
        %846 = vmatmul.mubr.bf16.gmra.mxu0 %v693
        %v847 = vpop.f32.mrf.mxu0
        %v848 = vadd.f32 %v715, %v847
        %v849 = vpop.f32.mrf.mxu0
        %v850 = vpop.f32.mrf.mxu0
        %v851 = vadd.f32 %v715, %v850
        %v852 = vpop.f32.mrf.mxu0
        %853 = vdwg.mxu0
        %854 = vst [vmem:[%s280] sm:$0xff] %v800
        %855 = vst [vmem:[%s280 + $0x8] sm:$0xff] %v803
        %856 = vst [vmem:[%s280 + $0x10] sm:$0xff] %v808
        %857 = vst [vmem:[%s280 + $0x18] sm:$0xff] %v811
        %858 = vst [vmem:[%s280 + $0x20] sm:$0xff] %v816
        %859 = vst [vmem:[%s280 + $0x28] sm:$0xff] %v819
        %860 = vst [vmem:[%s280 + $0x30] sm:$0xff] %v824
        %861 = vst [vmem:[%s280 + $0x38] sm:$0xff] %v827
        %862 = vst [vmem:[%s280 + $0x40] sm:$0xff] %v832
        %863 = vst [vmem:[%s280 + $0x48] sm:$0xff] %v835
        %864 = vst [vmem:[%s280 + $0x50] sm:$0xff] %v840
        %865 = vst [vmem:[%s280 + $0x58] sm:$0xff] %v843
        %866 = vst [vmem:[%s280 + $0x60] sm:$0xff] %v848
        %867 = vst [vmem:[%s280 + $0x68] sm:$0xff] %v851
        %s868 = sand.u32 %s178, 1
        %s869 = sand.u32 %s178, 1
        %s870 = smul.addr %s869, 112
        %s871 = scalar_lea.vmem [#allocation2], %s870
        // Predicated region
        $region49: #{mlp_forward.1} parent=47 // pred_check
          %p872 = pneg %p188
        $region50: #{mlp_forward.1} parent=47 // pred_check_branch
          %874 = sbr.rel (%p872) target = $region52
        $region51: #{mlp_forward.1} parent=47 // pred_region
          %s875 = smul.u32 14, %s18
          %s876 = ssub.s32 25, %s875
          %p877 = scmp.lt.s32.totalorder %s876, 14
          %s878 = scalar_select %p877, %s876, 14
          %s879 = smul.u32 128, %s878
          %p880 = scmp.ne.s32.totalorder 0, %s879
          %s881 = smul.addr %s875, 8
          %s882 = scalar_lea.vmem %s7, %s881
          // Predicated region
          $region53: #{mlp_forward.1} parent=51 // pred_check
            %p883 = pneg %p880
          $region54: #{mlp_forward.1} parent=51 // pred_check_branch
            %885 = sbr.rel (%p883) target = $region56
          $region55: #{mlp_forward.1} parent=51 // pred_region
            // Predicated region
            $region57: #{mlp_forward.1} parent=55 // pred_check
              _
            $region58: #{mlp_forward.1} parent=55 // pred_check_branch
              %887 = sbr.rel (0) target = $region60
            $region59: #{mlp_forward.1} parent=55 // pred_region
              // Predicated region
              $region79: #{mlp_forward.1} parent=59 // pred_check
                _
              $region80: #{mlp_forward.1} parent=59 // pred_check_branch
                %964 = sbr.rel (0) target = $region82
              $region81: #{mlp_forward.1} parent=59 // pred_region
                %s965 = sdiv.u32.pop %s878, 14
                %s966 = srem.u32.pop %s878, 14
                // While loop
                $region83: #{mlp_forward.1} parent=81 // loop_pre_header
                  _
                $region84: #{mlp_forward.1} parent=81 // loop_header
                  %s968 = sphi 0, %s970
                  %p969 = scmp.ge.s32.totalorder %s968, %s965
                  %s973 = sphi 0, %s1006
                  %s974 = sphi %s871, %s1009
                  %s975 = sphi %s882, %s1010
                $region85: #{mlp_forward.1} parent=81 // loop_header_branch
                  %972 = sbr.rel (%p969) target = $region89
                $region86: #{mlp_forward.1} parent=81 // loop_body
                  %v976 = vld [vmem:[%s974] sm:$0xff]
                  %977 = vst [vmem:[%s975] sm:$0xff] %v976
                  %v978 = vld [vmem:[%s974 + $0x8] sm:$0xff]
                  %979 = vst [vmem:[%s975 + $0x8] sm:$0xff] %v978
                  %v980 = vld [vmem:[%s974 + $0x10] sm:$0xff]
                  %981 = vst [vmem:[%s975 + $0x10] sm:$0xff] %v980
                  %v982 = vld [vmem:[%s974 + $0x18] sm:$0xff]
                  %983 = vst [vmem:[%s975 + $0x18] sm:$0xff] %v982
                  %v984 = vld [vmem:[%s974 + $0x20] sm:$0xff]
                  %985 = vst [vmem:[%s975 + $0x20] sm:$0xff] %v984
                  %v986 = vld [vmem:[%s974 + $0x28] sm:$0xff]
                  %987 = vst [vmem:[%s975 + $0x28] sm:$0xff] %v986
                  %v988 = vld [vmem:[%s974 + $0x30] sm:$0xff]
                  %989 = vst [vmem:[%s975 + $0x30] sm:$0xff] %v988
                  %v990 = vld [vmem:[%s974 + $0x38] sm:$0xff]
                  %991 = vst [vmem:[%s975 + $0x38] sm:$0xff] %v990
                  %v992 = vld [vmem:[%s974 + $0x40] sm:$0xff]
                  %993 = vst [vmem:[%s975 + $0x40] sm:$0xff] %v992
                  %v994 = vld [vmem:[%s974 + $0x48] sm:$0xff]
                  %995 = vst [vmem:[%s975 + $0x48] sm:$0xff] %v994
                  %v996 = vld [vmem:[%s974 + $0x50] sm:$0xff]
                  %997 = vst [vmem:[%s975 + $0x50] sm:$0xff] %v996
                  %v998 = vld [vmem:[%s974 + $0x58] sm:$0xff]
                  %999 = vst [vmem:[%s975 + $0x58] sm:$0xff] %v998
                  %v1000 = vld [vmem:[%s974 + $0x60] sm:$0xff]
                  %1001 = vst [vmem:[%s975 + $0x60] sm:$0xff] %v1000
                  %v1002 = vld [vmem:[%s974 + $0x68] sm:$0xff]
                  %1003 = vst [vmem:[%s975 + $0x68] sm:$0xff] %v1002
                  %s1004 = sadd.s32 1, %s973
                  %p1005 = scmp.ge.s32.totalorder %s1004, %s965
                  %s1006 = scalar_select %p1005, 0, %s1004
                  %s1007 = smul.u32 %s1006, 112
                  %s1008 = smul.u32 %s1006, 112
                  %s1009 = scalar_lea.vmem %s871, %s1007 [#allocation2]
                  %s1010 = scalar_lea.vmem %s882, %s1008
                $region87: #{mlp_forward.1} parent=81 // loop_footer
                  %s970 = sadd.s32 %s968, 1
                $region88: #{mlp_forward.1} parent=81 // loop_footer_branch
                  %967 = sbr.rel target = $region84
                $region89: #{mlp_forward.1} parent=81 // loop_exit
                  _
                %s1011 = sdiv.u32.pop %s878, 14
                %s1012 = srem.u32.pop %s878, 14
                %s1013 = smul.u32 %s1011, 14
                %s1014 = smul.u32 8, %s1013
                %s1015 = scalar_lea.vmem %s871, %s1014 [#allocation2]
                %s1016 = smul.u32 8, %s1013
                %s1017 = scalar_lea.vmem %s882, %s1016
                // While loop
                $region90: #{mlp_forward.1} parent=81 // loop_pre_header
                  _
                $region91: #{mlp_forward.1} parent=81 // loop_header
                  %s1019 = sphi 0, %s1021
                  %p1020 = scmp.ge.s32.totalorder %s1019, %s1012
                  %s1024 = sphi 0, %s1031
                  %s1025 = sphi %s1015, %s1034
                  %s1026 = sphi %s1017, %s1035
                $region92: #{mlp_forward.1} parent=81 // loop_header_branch
                  %1023 = sbr.rel (%p1020) target = $region96
                $region93: #{mlp_forward.1} parent=81 // loop_body
                  %v1027 = vld [vmem:[%s1025] sm:$0xff]
                  %1028 = vst [vmem:[%s1026] sm:$0xff] %v1027
                  %s1029 = sadd.s32 1, %s1024
                  %p1030 = scmp.ge.s32.totalorder %s1029, %s1012
                  %s1031 = scalar_select %p1030, 0, %s1029
                  %s1032 = smul.u32 %s1031, 8
                  %s1033 = smul.u32 %s1031, 8
                  %s1034 = scalar_lea.vmem %s1015, %s1032 [#allocation2]
                  %s1035 = scalar_lea.vmem %s1017, %s1033
                $region94: #{mlp_forward.1} parent=81 // loop_footer
                  %s1021 = sadd.s32 %s1019, 1
                $region95: #{mlp_forward.1} parent=81 // loop_footer_branch
                  %1018 = sbr.rel target = $region91
                $region96: #{mlp_forward.1} parent=81 // loop_exit
                  _
              $region82: #{mlp_forward.1} parent=59 // pred_fallthru
                _
              // Predicated region
              $region97: #{mlp_forward.1} parent=59 // pred_check
                _
              $region98: #{mlp_forward.1} parent=59 // pred_check_branch
                %1037 = sbr.rel target = $region100
              $region99: #{mlp_forward.1} parent=59 // pred_region
                _
              $region100: #{mlp_forward.1} parent=59 // pred_fallthru
                _
            $region60: #{mlp_forward.1} parent=55 // pred_fallthru
              _
            // Predicated region
            $region61: #{mlp_forward.1} parent=55 // pred_check
              _
            $region62: #{mlp_forward.1} parent=55 // pred_check_branch
              %889 = sbr.rel target = $region64
            $region63: #{mlp_forward.1} parent=55 // pred_region
              %s891 = ssub.s32 256, 1
              %s892 = sdiv.u32.pop %s878, 14
              %s893 = srem.u32.pop %s878, 14
              // While loop
              $region65: #{mlp_forward.1} parent=63 // loop_pre_header
                _
              $region66: #{mlp_forward.1} parent=63 // loop_header
                %s895 = sphi 0, %s897
                %p896 = scmp.ge.s32.totalorder %s895, %s892
                %s900 = sphi 0, %s933
                %s901 = sphi %s871, %s936
                %s902 = sphi %s882, %s937
              $region67: #{mlp_forward.1} parent=63 // loop_header_branch
                %899 = sbr.rel (%p896) target = $region71
              $region68: #{mlp_forward.1} parent=63 // loop_body
                %v903 = vld [vmem:[%s901] sm:%s891]
                %904 = vst [vmem:[%s902] sm:%s891] %v903
                %v905 = vld [vmem:[%s901 + $0x8] sm:%s891]
                %906 = vst [vmem:[%s902 + $0x8] sm:%s891] %v905
                %v907 = vld [vmem:[%s901 + $0x10] sm:%s891]
                %908 = vst [vmem:[%s902 + $0x10] sm:%s891] %v907
                %v909 = vld [vmem:[%s901 + $0x18] sm:%s891]
                %910 = vst [vmem:[%s902 + $0x18] sm:%s891] %v909
                %v911 = vld [vmem:[%s901 + $0x20] sm:%s891]
                %912 = vst [vmem:[%s902 + $0x20] sm:%s891] %v911
                %v913 = vld [vmem:[%s901 + $0x28] sm:%s891]
                %914 = vst [vmem:[%s902 + $0x28] sm:%s891] %v913
                %v915 = vld [vmem:[%s901 + $0x30] sm:%s891]
                %916 = vst [vmem:[%s902 + $0x30] sm:%s891] %v915
                %v917 = vld [vmem:[%s901 + $0x38] sm:%s891]
                %918 = vst [vmem:[%s902 + $0x38] sm:%s891] %v917
                %v919 = vld [vmem:[%s901 + $0x40] sm:%s891]
                %920 = vst [vmem:[%s902 + $0x40] sm:%s891] %v919
                %v921 = vld [vmem:[%s901 + $0x48] sm:%s891]
                %922 = vst [vmem:[%s902 + $0x48] sm:%s891] %v921
                %v923 = vld [vmem:[%s901 + $0x50] sm:%s891]
                %924 = vst [vmem:[%s902 + $0x50] sm:%s891] %v923
                %v925 = vld [vmem:[%s901 + $0x58] sm:%s891]
                %926 = vst [vmem:[%s902 + $0x58] sm:%s891] %v925
                %v927 = vld [vmem:[%s901 + $0x60] sm:%s891]
                %928 = vst [vmem:[%s902 + $0x60] sm:%s891] %v927
                %v929 = vld [vmem:[%s901 + $0x68] sm:%s891]
                %930 = vst [vmem:[%s902 + $0x68] sm:%s891] %v929
                %s931 = sadd.s32 1, %s900
                %p932 = scmp.ge.s32.totalorder %s931, %s892
                %s933 = scalar_select %p932, 0, %s931
                %s934 = smul.u32 %s933, 112
                %s935 = smul.u32 %s933, 112
                %s936 = scalar_lea.vmem %s871, %s934 [#allocation2]
                %s937 = scalar_lea.vmem %s882, %s935
              $region69: #{mlp_forward.1} parent=63 // loop_footer
                %s897 = sadd.s32 %s895, 1
              $region70: #{mlp_forward.1} parent=63 // loop_footer_branch
                %894 = sbr.rel target = $region66
              $region71: #{mlp_forward.1} parent=63 // loop_exit
                _
              %s938 = sdiv.u32.pop %s878, 14
              %s939 = srem.u32.pop %s878, 14
              %s940 = smul.u32 %s938, 14
              %s941 = smul.u32 8, %s940
              %s942 = scalar_lea.vmem %s871, %s941 [#allocation2]
              %s943 = smul.u32 8, %s940
              %s944 = scalar_lea.vmem %s882, %s943
              // While loop
              $region72: #{mlp_forward.1} parent=63 // loop_pre_header
                _
              $region73: #{mlp_forward.1} parent=63 // loop_header
                %s946 = sphi 0, %s948
                %p947 = scmp.ge.s32.totalorder %s946, %s939
                %s951 = sphi 0, %s958
                %s952 = sphi %s942, %s961
                %s953 = sphi %s944, %s962
              $region74: #{mlp_forward.1} parent=63 // loop_header_branch
                %950 = sbr.rel (%p947) target = $region78
              $region75: #{mlp_forward.1} parent=63 // loop_body
                %v954 = vld [vmem:[%s952] sm:%s891]
                %955 = vst [vmem:[%s953] sm:%s891] %v954
                %s956 = sadd.s32 1, %s951
                %p957 = scmp.ge.s32.totalorder %s956, %s939
                %s958 = scalar_select %p957, 0, %s956
                %s959 = smul.u32 %s958, 8
                %s960 = smul.u32 %s958, 8
                %s961 = scalar_lea.vmem %s942, %s959 [#allocation2]
                %s962 = scalar_lea.vmem %s944, %s960
              $region76: #{mlp_forward.1} parent=63 // loop_footer
                %s948 = sadd.s32 %s946, 1
              $region77: #{mlp_forward.1} parent=63 // loop_footer_branch
                %945 = sbr.rel target = $region73
              $region78: #{mlp_forward.1} parent=63 // loop_exit
                _
            $region64: #{mlp_forward.1} parent=55 // pred_fallthru
              _
          $region56: #{mlp_forward.1} parent=51 // pred_fallthru
            _
          %1038 = vnop
        $region52: #{mlp_forward.1} parent=47 // pred_fallthru
          _
      $region48: #{mlp_forward.1} parent=5 // pred_fallthru
        _
      %p1039 = scmp.le.s32.totalorder 2, %s13
      // Predicated region
      $region101: #{mlp_forward.1} parent=5 // pred_check
        %p1040 = pneg %p1039
      $region102: #{mlp_forward.1} parent=5 // pred_check_branch
        %1042 = sbr.rel (%p1040) target = $region104
      $region103: #{mlp_forward.1} parent=5 // pred_region
        %s1043 = ssub.s32 %s13, 2
        // Predicated region
        $region105: #{mlp_forward.1} parent=103 // pred_check
          %p1044 = pneg %p194
        $region106: #{mlp_forward.1} parent=103 // pred_check_branch
          %1046 = sbr.rel (%p1044) target = $region108
        $region107: #{mlp_forward.1} parent=103 // pred_region
          %s1047 = sand.u32 %s179, 1
          %s1048 = sand.u32 %s179, 1
          %s1049 = smul.addr %s1048, 112
          %s1050 = scalar_lea.vmem [#allocation2], %s1049
        $region108: #{mlp_forward.1} parent=103 // pred_fallthru
          _
      $region104: #{mlp_forward.1} parent=5 // pred_fallthru
        _
    $region6: #{mlp_forward.1} parent=1 // loop_footer
      %s17 = sadd.s32 1, %s13
    $region7: #{mlp_forward.1} parent=1 // loop_footer_branch
      %12 = sbr.rel target = $region3
    $region8: #{mlp_forward.1} parent=1 // loop_exit
      _

</llo_original>
